<compile_context>
chip_gen: v5e
topology: v5e:2x2
jax: 0.10.0
libtpu: 0.0.40
codegen_flags: <defaults>
</compile_context>

<pallas_src>
import jax
import jax.numpy as jnp
from jax import lax
from jax.experimental import pallas as pl
from jax.experimental.pallas import tpu as pltpu

_LANE = 128


def _equivariant_kernel(x_ref, wl_ref, wg_ref, o_ref):
    # x_ref:  (TB, S, C_in)        TB batch elements per grid step
    # wl_ref: (C_out_pad, C_in)    Lambda weight, original nn.Linear layout
    # wg_ref: (C_out_pad, C_in)    Gamma  weight, original nn.Linear layout
    # o_ref:  (TB, S, C_out_pad)   lane-dense (C_out_pad % 128 == 0)
    tb, s, c_in = x_ref.shape
    x3 = x_ref[...]                                   # (TB, S, C_in)
    x2 = x3.reshape(tb * s, c_in)                     # one big MXU matmul
    xm = jnp.max(x3, axis=1)                          # (TB, C_in) max over set dim

    # Contract on the C_in axis of the (C_out, C_in) weights -> x @ W.T
    dn = (((1,), (1,)), ((), ()))
    lam = lax.dot_general(x2, wl_ref[...], dn,
                          preferred_element_type=jnp.float32)   # (TB*S, C_out_pad)
    gam = lax.dot_general(xm, wg_ref[...], dn,
                          preferred_element_type=jnp.float32)   # (TB,   C_out_pad)

    out = lam.reshape(tb, s, -1) - gam[:, None, :]    # broadcast over set dim
    o_ref[...] = out.astype(o_ref.dtype)


def _pick_batch_tile(B, S, C_in, C_out_pad, dtype_bytes=4,
                     vmem_budget=12 * 1024 * 1024):
    """Largest divisor of B whose double-buffered x/out tiles + weights fit."""
    weights = 2 * C_out_pad * C_in * dtype_bytes * 2      # 2 weights, double-buffered
    for tb in range(B, 0, -1):
        if B % tb:
            continue
        tiles = 2 * tb * S * (C_in + C_out_pad) * dtype_bytes  # in + out, x2 buffers
        if tiles + weights <= vmem_budget:
            return tb
    return 1


def equivariant_layer(x, w_lambda, w_gamma):
    """x: (B, S, C_in); w_lambda / w_gamma: (C_out, C_in) as in nn.Linear (no bias)."""
    B, S, C_in = x.shape
    C_out = w_lambda.shape[0]

    # Lane-dense output: pad the (tiny) weights' out dim to a multiple of 128.
    C_out_pad = ((C_out + _LANE - 1) // _LANE) * _LANE
    pad = C_out_pad - C_out
    if pad:
        w_lambda = jnp.pad(w_lambda, ((0, pad), (0, 0)))
        w_gamma = jnp.pad(w_gamma, ((0, pad), (0, 0)))

    tb = _pick_batch_tile(B, S, C_in, C_out_pad, dtype_bytes=x.dtype.itemsize)
    grid = (B // tb,)

    out_padded = pl.pallas_call(
        _equivariant_kernel,
        out_shape=jax.ShapeDtypeStruct((B, S, C_out_pad), x.dtype),
        grid_spec=pltpu.PrefetchScalarGridSpec(
            num_scalar_prefetch=0,
            grid=grid,
            in_specs=[
                pl.BlockSpec((tb, S, C_in), lambda b: (b, 0, 0)),
                # Grid-invariant weight tiles (constant block index -> no re-DMA).
                pl.BlockSpec((C_out_pad, C_in), lambda b: (0, 0)),
                pl.BlockSpec((C_out_pad, C_in), lambda b: (0, 0)),
            ],
            out_specs=pl.BlockSpec((tb, S, C_out_pad), lambda b: (b, 0, 0)),
        ),
        compiler_params=pltpu.CompilerParams(
            dimension_semantics=("parallel",)),
    )(x, w_lambda, w_gamma)

    # TODO(synk): for very large S, compute the set-max / Gamma term in a tiny
    # separate pass so the Lambda matmul can tile S without holding the whole
    # (S, C_in) slab resident (matters on v7x's 64 MiB VMEM).
    return out_padded[..., :C_out] if pad else out_padded


def reference(x, w_lambda, w_gamma):
    xm = jnp.max(x, axis=1, keepdims=True)
    return x @ w_lambda.T - xm @ w_gamma.T


if __name__ == "__main__":
    # Small shapes consistent with the module's forward: (batch, set, in_channels)
    B, S, C_in, C_out = 2, 8, 32, 32

    key = jax.random.PRNGKey(0)
    kx, kl, kg = jax.random.split(key, 3)

    x = jax.random.normal(kx, (B, S, C_in), dtype=jnp.float32)
    # Deterministic synthetic weights; nn.Linear weight shape is (out, in).
    bound = 1.0 / (C_in ** 0.5)
    w_lambda = jax.random.uniform(kl, (C_out, C_in), jnp.float32, -bound, bound)
    w_gamma = jax.random.uniform(kg, (C_out, C_in), jnp.float32, -bound, bound)

    out = equivariant_layer(x, w_lambda, w_gamma)
    out = jax.block_until_ready(out)

    ref = reference(x, w_lambda, w_gamma)
    assert out.shape == (B, S, C_out)
    assert jnp.allclose(out, ref, atol=1e-5, rtol=1e-5)

    print("KERNEL_OK")
</pallas_src>

<mosaic_0001>
module attributes {stable_mosaic.version = 11 : i64} {
  func.func @_equivariant_kernel(%arg0: i32, %arg1: memref<2x8x32xf32, #tpu.memory_space<vmem>>, %arg2: memref<128x32xf32, #tpu.memory_space<vmem>>, %arg3: memref<128x32xf32, #tpu.memory_space<vmem>>, %arg4: memref<2x8x128xf32, #tpu.memory_space<vmem>>) attributes {dimension_semantics = [#tpu.dimension_semantics<parallel>], iteration_bounds = array<i64: 1>, scalar_prefetch = 0 : i64, scratch_operands = 0 : i64, tpu.core_type = #tpu.core_type<tc>, window_params = [{transform_indices = @transform_0, window_bounds = array<i64: 2, 8, 32>}, {pipeline_mode = #tpu.pipeline_mode<synchronous>, transform_indices = @transform_1, window_bounds = array<i64: 128, 32>}, {pipeline_mode = #tpu.pipeline_mode<synchronous>, transform_indices = @transform_2, window_bounds = array<i64: 128, 32>}, {transform_indices = @transform_3, window_bounds = array<i64: 2, 8, 128>}]} {
    %c0 = arith.constant 0 : index
    %c0_0 = arith.constant 0 : index
    %c0_1 = arith.constant 0 : index
    %0 = vector.load %arg1[%c0, %c0_0, %c0_1] : memref<2x8x32xf32, #tpu.memory_space<vmem>>, vector<2x8x32xf32>
    %1 = vector.shape_cast %0 : vector<2x8x32xf32> to vector<16x32xf32>
    %cst = arith.constant dense<0xFF800000> : vector<2x32xf32>
    %2 = vector.multi_reduction <maximumf>, %0, %cst [1] : vector<2x8x32xf32> to vector<2x32xf32>
    %c0_2 = arith.constant 0 : index
    %c0_3 = arith.constant 0 : index
    %3 = vector.load %arg2[%c0_2, %c0_3] : memref<128x32xf32, #tpu.memory_space<vmem>>, vector<128x32xf32>
    %cst_4 = arith.constant dense<0.000000e+00> : vector<16x128xf32>
    %4 = tpu.matmul %1, %3, %cst_4 {dimension_numbers = #tpu.dot_dimension_numbers<[1], [1], [0], [0], [0, 0, 1, 0], [], []>} : vector<16x32xf32>, vector<128x32xf32>, vector<16x128xf32> -> vector<16x128xf32>
    %c0_5 = arith.constant 0 : index
    %c0_6 = arith.constant 0 : index
    %5 = vector.load %arg3[%c0_5, %c0_6] : memref<128x32xf32, #tpu.memory_space<vmem>>, vector<128x32xf32>
    %cst_7 = arith.constant dense<0.000000e+00> : vector<2x128xf32>
    %6 = tpu.matmul %2, %5, %cst_7 {dimension_numbers = #tpu.dot_dimension_numbers<[1], [1], [0], [0], [0, 0, 1, 0], [], []>} : vector<2x32xf32>, vector<128x32xf32>, vector<2x128xf32> -> vector<2x128xf32>
    %7 = vector.shape_cast %4 : vector<16x128xf32> to vector<2x8x128xf32>
    %8 = vector.shape_cast %6 : vector<2x128xf32> to vector<2x1x128xf32>
    %9 = vector.broadcast %8 : vector<2x1x128xf32> to vector<2x8x128xf32>
    %10 = arith.subf %7, %9 : vector<2x8x128xf32>
    %c0_8 = arith.constant 0 : index
    %c0_9 = arith.constant 0 : index
    %c0_10 = arith.constant 0 : index
    %11 = vector.load %arg4[%c0_8, %c0_9, %c0_10] : memref<2x8x128xf32, #tpu.memory_space<vmem>>, vector<2x8x128xf32>
    tpu.vector_store %arg4[%c0_8, %c0_9, %c0_10], %10 {strides = array<i32>} : memref<2x8x128xf32, #tpu.memory_space<vmem>>, vector<2x8x128xf32>,
    return
  }
  func.func @transform_0(%arg0: i32) -> (i32, i32, i32) {
    %c0_i32 = arith.constant 0 : i32
    %c0_i32_0 = arith.constant 0 : i32
    %c0_i32_1 = arith.constant 0 : i32
    return %arg0, %c0_i32, %c0_i32_0 : i32, i32, i32
  }
  func.func @transform_1(%arg0: i32) -> (i32, i32) {
    %c0_i32 = arith.constant 0 : i32
    %c0_i32_0 = arith.constant 0 : i32
    %c0_i32_1 = arith.constant 0 : i32
    return %c0_i32, %c0_i32_0 : i32, i32
  }
  func.func @transform_2(%arg0: i32) -> (i32, i32) {
    %c0_i32 = arith.constant 0 : i32
    %c0_i32_0 = arith.constant 0 : i32
    %c0_i32_1 = arith.constant 0 : i32
    return %c0_i32, %c0_i32_0 : i32, i32
  }
  func.func @transform_3(%arg0: i32) -> (i32, i32, i32) {
    %c0_i32 = arith.constant 0 : i32
    %c0_i32_0 = arith.constant 0 : i32
    %c0_i32_1 = arith.constant 0 : i32
    return %arg0, %c0_i32, %c0_i32_0 : i32, i32, i32
  }
}

</mosaic_0001>

<llo_original>
// kernel: tpu_custom_call.1
$region0: #{tpu_custom_call.1}
  #allocation0 [shape = 'u32[]', space=smem, size = 0x4, offset = 0x4, fixed_abs, tag = 'smem constant byte address 0x4 - core index']
  #allocation1 [shape = 'u32[72,128]{1,0:T(1,128)}', space=vmem, size = 0x9000, scoped, tag = 'internal scratch']
  %s0 = inlined_call_operand.vmem [shape: f32[2,8,32], index: 0, kind: input, shape index: {}]
  %s1 = inlined_call_operand.vmem [shape: f32[128,32], index: 1, kind: input, shape index: {}]
  %s2 = inlined_call_operand.vmem [shape: f32[128,32], index: 2, kind: input, shape index: {}]
  %s3 = inlined_call_operand.hbm [shape: f32[2,8,128], index: 3, kind: output, shape index: {}]
  %s4 = sld [smem:[#allocation0]]
  $region22: #{tpu_custom_call.1} parent=0
    _
  %s6 = ssub.s32 1, %s4
  %s7 = scalar_select 0, %s6, %s4
  $region1: #{tpu_custom_call.1} parent=0
    #allocation2 [shape = 'u8[8192]{0}', space=vmem, size = 0x2000, scoped, tag = 'output window, operand 0, single buffered']
    #allocation3 [shape = 's32[1]{0}', space=sflag, size = 0x4, scoped, tag = 'scoped memory for tpu_custom_call.1']
    %8 = vsyncpa [#allocation3], 0
    // Predicated region
    $region2: #{tpu_custom_call.1} parent=1 // pred_check
      _
    $region3: #{tpu_custom_call.1} parent=1 // pred_check_branch
      %10 = sbr.rel (0) target = $region5
    $region4: #{tpu_custom_call.1} parent=1 // pred_region
      _
    $region5: #{tpu_custom_call.1} parent=1 // pred_fallthru
      _
    // Predicated region
    $region6: #{tpu_custom_call.1} parent=1 // pred_check
      _
    $region7: #{tpu_custom_call.1} parent=1 // pred_check_branch
      %12 = sbr.rel (0) target = $region9
    $region8: #{tpu_custom_call.1} parent=1 // pred_region
      _
    $region9: #{tpu_custom_call.1} parent=1 // pred_fallthru
      _
    // Predicated region
    $region10: #{tpu_custom_call.1} parent=1 // pred_check
      _
    $region11: #{tpu_custom_call.1} parent=1 // pred_check_branch
      %14 = sbr.rel (0) target = $region13
    $region12: #{tpu_custom_call.1} parent=1 // pred_region
      _
    $region13: #{tpu_custom_call.1} parent=1 // pred_fallthru
      _
    %v15 = vld [vmem:[%s0] sm:$0xff]
    %v16 = vld [vmem:[%s0 + $0x8] sm:$0xff]
    %vm17 = vcmask 261120
    %v18 = vsel %vm17, %v15, -inf
    %v19 = vrot.slane %v18, 4
    %v20 = vmax.f32 %v18, %v19
    %v21 = vrot.slane %v20, 2
    %v22 = vmax.f32 %v20, %v21
    %v23 = vrot.slane %v22, 1
    %v24 = vmax.f32 %v22, %v23
    %v25 = vsel %vm17, %v16, -inf
    %v26 = vrot.slane %v25, 4
    %v27 = vmax.f32 %v25, %v26
    %v28 = vrot.slane %v27, 2
    %v29 = vmax.f32 %v27, %v28
    %v30 = vrot.slane %v29, 1
    %v31 = vmax.f32 %v29, %v30
    %v32 = vld [vmem:[%s1] sm:$0xff]
    %v33 = vld [vmem:[%s1 + $0x8] sm:$0xff]
    %v34 = vld [vmem:[%s1 + $0x10] sm:$0xff]
    %v35 = vld [vmem:[%s1 + $0x18] sm:$0xff]
    %v36 = vld [vmem:[%s1 + $0x20] sm:$0xff]
    %v37 = vld [vmem:[%s1 + $0x28] sm:$0xff]
    %v38 = vld [vmem:[%s1 + $0x30] sm:$0xff]
    %v39 = vld [vmem:[%s1 + $0x38] sm:$0xff]
    %v40 = vld [vmem:[%s1 + $0x40] sm:$0xff]
    %v41 = vld [vmem:[%s1 + $0x48] sm:$0xff]
    %v42 = vld [vmem:[%s1 + $0x50] sm:$0xff]
    %v43 = vld [vmem:[%s1 + $0x58] sm:$0xff]
    %v44 = vld [vmem:[%s1 + $0x60] sm:$0xff]
    %v45 = vld [vmem:[%s1 + $0x68] sm:$0xff]
    %v46 = vld [vmem:[%s1 + $0x70] sm:$0xff]
    %v47 = vld [vmem:[%s1 + $0x78] sm:$0xff]
    %v49 = vsel %vm17, %v15, 0
    %v52 = vsel %vm17, %v16, 0
    %v55 = vsel %vm17, %v32, 0
    %v58 = vsel %vm17, %v33, 0
    %v61 = vsel %vm17, %v34, 0
    %v64 = vsel %vm17, %v35, 0
    %v67 = vsel %vm17, %v36, 0
    %v70 = vsel %vm17, %v37, 0
    %v73 = vsel %vm17, %v38, 0
    %v76 = vsel %vm17, %v39, 0
    %v79 = vsel %vm17, %v40, 0
    %v82 = vsel %vm17, %v41, 0
    %v85 = vsel %vm17, %v42, 0
    %v88 = vsel %vm17, %v43, 0
    %v91 = vsel %vm17, %v44, 0
    %v94 = vsel %vm17, %v45, 0
    %v97 = vsel %vm17, %v46, 0
    %v100 = vsel %vm17, %v47, 0
    %102 = vmatpush.xpose.msra.mxu0 %v100
    %103 = vmatpush.xpose.msra.mxu0 %v97
    %104 = vmatpush.xpose.msra.mxu0 %v94
    %105 = vmatpush.xpose.msra.mxu0 %v91
    %106 = vmatpush.xpose.msra.mxu0 %v88
    %107 = vmatpush.xpose.msra.mxu0 %v85
    %108 = vmatpush.xpose.msra.mxu0 %v82
    %109 = vmatpush.xpose.msra.mxu0 %v79
    %110 = vmatpush.xpose.msra.mxu0 %v76
    %111 = vmatpush.xpose.msra.mxu0 %v73
    %112 = vmatpush.xpose.msra.mxu0 %v70
    %113 = vmatpush.xpose.msra.mxu0 %v67
    %114 = vmatpush.xpose.msra.mxu0 %v64
    %115 = vmatpush.xpose.msra.mxu0 %v61
    %116 = vmatpush.xpose.msra.mxu0 %v58
    %117 = vmatpush.xpose.msra.mxu0 %v55
    %118 = vmatmul.f32.gmra.mxu0 %v49
    %v119 = vpop.f32.mrf.mxu0
    %v120 = vadd.f32 0.0, %v119
    %121 = vmatmul.f32.gmra.mxu0 %v52
    %v122 = vpop.f32.mrf.mxu0
    %v123 = vadd.f32 0.0, %v122
    %124 = vdwg.mxu0
    %v125 = vld [vmem:[%s2] sm:$0xff]
    %v126 = vld [vmem:[%s2 + $0x8] sm:$0xff]
    %v127 = vld [vmem:[%s2 + $0x10] sm:$0xff]
    %v128 = vld [vmem:[%s2 + $0x18] sm:$0xff]
    %v129 = vld [vmem:[%s2 + $0x20] sm:$0xff]
    %v130 = vld [vmem:[%s2 + $0x28] sm:$0xff]
    %v131 = vld [vmem:[%s2 + $0x30] sm:$0xff]
    %v132 = vld [vmem:[%s2 + $0x38] sm:$0xff]
    %v133 = vld [vmem:[%s2 + $0x40] sm:$0xff]
    %v134 = vld [vmem:[%s2 + $0x48] sm:$0xff]
    %v135 = vld [vmem:[%s2 + $0x50] sm:$0xff]
    %v136 = vld [vmem:[%s2 + $0x58] sm:$0xff]
    %v137 = vld [vmem:[%s2 + $0x60] sm:$0xff]
    %v138 = vld [vmem:[%s2 + $0x68] sm:$0xff]
    %v139 = vld [vmem:[%s2 + $0x70] sm:$0xff]
    %v140 = vld [vmem:[%s2 + $0x78] sm:$0xff]
    %vm143 = vcmask 1041409
    %v144 = vsel %vm143, %v31, %v24
    %v145 = vsel %vm17, %v144, 0
    %v148 = vsel %vm17, %v125, 0
    %v151 = vsel %vm17, %v126, 0
    %v154 = vsel %vm17, %v127, 0
    %v157 = vsel %vm17, %v128, 0
    %v160 = vsel %vm17, %v129, 0
    %v163 = vsel %vm17, %v130, 0
    %v166 = vsel %vm17, %v131, 0
    %v169 = vsel %vm17, %v132, 0
    %v172 = vsel %vm17, %v133, 0
    %v175 = vsel %vm17, %v134, 0
    %v178 = vsel %vm17, %v135, 0
    %v181 = vsel %vm17, %v136, 0
    %v184 = vsel %vm17, %v137, 0
    %v187 = vsel %vm17, %v138, 0
    %v190 = vsel %vm17, %v139, 0
    %v193 = vsel %vm17, %v140, 0
    %195 = vmatpush.xpose.msra.mxu0 %v193
    %196 = vmatpush.xpose.msra.mxu0 %v190
    %197 = vmatpush.xpose.msra.mxu0 %v187
    %198 = vmatpush.xpose.msra.mxu0 %v184
    %199 = vmatpush.xpose.msra.mxu0 %v181
    %200 = vmatpush.xpose.msra.mxu0 %v178
    %201 = vmatpush.xpose.msra.mxu0 %v175
    %202 = vmatpush.xpose.msra.mxu0 %v172
    %203 = vmatpush.xpose.msra.mxu0 %v169
    %204 = vmatpush.xpose.msra.mxu0 %v166
    %205 = vmatpush.xpose.msra.mxu0 %v163
    %206 = vmatpush.xpose.msra.mxu0 %v160
    %207 = vmatpush.xpose.msra.mxu0 %v157
    %208 = vmatpush.xpose.msra.mxu0 %v154
    %209 = vmatpush.xpose.msra.mxu0 %v151
    %210 = vmatpush.xpose.msra.mxu0 %v148
    %211 = vmatmul.f32.gmra.mxu0 %v145
    %v212 = vpop.f32.mrf.mxu0
    %v213 = vadd.f32 0.0, %v212
    %214 = vdwg.mxu0
    %v216 = vrot.slane %v213, 1
    %v217 = vperm.slane %v213, 0
    %v218 = vperm.slane %v216, 0
    %v221 = vsub.f32 %v120, %v217
    %v222 = vsub.f32 %v123, %v218
    %223 = vst [vmem:[#allocation2] sm:$0xff] %v221
    %224 = vst [vmem:[#allocation2 + $0x8] sm:$0xff] %v222
    // Predicated region
    $region14: #{tpu_custom_call.1} parent=1 // pred_check
      _
    $region15: #{tpu_custom_call.1} parent=1 // pred_check_branch
      %226 = sbr.rel (0) target = $region17
    $region16: #{tpu_custom_call.1} parent=1 // pred_region
      %228 = vsyncadd [#allocation3], 0
      %s229 = sshll.u32 [#allocation2], 4
      %s230 = int_to_ptr.vmem [resolvable:$true] %s229
      %s231 = sshll.u32 %s3, 4
      %s232 = int_to_ptr.hbm [resolvable:$true] %s231
      %237 = dma.vmem_to_hbm [thread:$0]  %s230, 256, %s232, [#allocation3], 128, 128, 8
    $region17: #{tpu_custom_call.1} parent=1 // pred_fallthru
      _
    // Predicated region
    $region18: #{tpu_custom_call.1} parent=1 // pred_check
      _
    $region19: #{tpu_custom_call.1} parent=1 // pred_check_branch
      %239 = sbr.rel (0) target = $region21
    $region20: #{tpu_custom_call.1} parent=1 // pred_region
      %241 = dma.done [#allocation3], 256
    $region21: #{tpu_custom_call.1} parent=1 // pred_fallthru
      _
    %242 = vsyncpa [#allocation3], 1

</llo_original>
